<compile_context>
chip_gen: v6e
topology: v6e:2x2x1
jax: 0.10.0
libtpu: 0.0.40
codegen_flags: <defaults>
</compile_context>

<pallas_src>
import functools

import jax
import jax.numpy as jnp
from jax.experimental import pallas as pl
from jax.experimental.pallas import tpu as pltpu

_ROW_PAD = -1      # sentinel: row is not part of the shifted [:, :-1] set (seq tail / grid pad)
_IGNORE = -100     # CrossEntropyLoss ignore_index (CE-ignored, KL-counted)

_ACC_SUB, _ACC_LANE = 8, 128   # accumulator output block, (sublane, lane) aligned


# ---------------------------------------------------------------------------
# Hardware-aware configuration
# ---------------------------------------------------------------------------
def _tpu_config():
    """Returns (tile_budget_bytes, vmem_limit_bytes, num_core_splits)."""
    vmem_cap = 64 * 1024 * 1024            # conservative fallback (v7x per-TC VMEM)
    two_tc = False
    try:
        kind = jax.devices()[0].device_kind.lower()
        # v4 / v7x present two TensorCores behind one device (megacore);
        # v5e / v6e are single-TC chips with 128 MiB VMEM.
        two_tc = ("v4" in kind) or ("7" in kind)
        if ("v5" in kind) or ("v6" in kind):
            vmem_cap = 128 * 1024 * 1024
    except Exception:
        pass
    try:
        info = pltpu.get_tpu_info()
        vmem_cap = int(getattr(info, "vmem_capacity_bytes", vmem_cap))
    except Exception:
        pass
    budget = (vmem_cap * 11) // 20         # ~55% of physical VMEM for the live tile estimate
    limit = (vmem_cap * 3) // 4            # scoped limit, headroom for compiler scratch
    return budget, limit, (2 if two_tc else 1)


def _choose_tile_rows(num_rows, vocab, in_bytes, has_teacher, budget):
    """Largest row tile (multiple of 8, <=2048) fitting the per-generation VMEM budget."""
    n_in = 2 if has_teacher else 1
    # Rough peak of live [TR, V] f32 temporaries (after removing full-tile sanitize
    # and restructuring the KL numerator).
    f32_tiles = 5 if has_teacher else 3
    per_row = f32_tiles * vocab * 4 + 2 * n_in * vocab * in_bytes   # temps + double-buffered DMA
    tr = budget // max(per_row, 1)
    tr = max(8, min(2048, int(tr)))
    tr = (tr // 8) * 8
    if num_rows < 8:
        return int(num_rows)               # block == full row extent (allowed by Pallas)
    rows8 = max(8, (num_rows // 8) * 8)    # don't exceed the row count (8-floored)
    return int(min(tr, rows8))


# ---------------------------------------------------------------------------
# In-kernel blocks
# ---------------------------------------------------------------------------
def _ce_block(aux, s_raw):
    """Cross-entropy pieces for one [TR, V] tile.

    Garbage rows (sentinel -1: seq tail, grid padding, OOB tail tile) are excluded
    with row-level *selects* so any NaN/Inf they produce never reaches the sums.
    Returns (ce_sum, ce_cnt, s_sh, row_valid).
    """
    row_valid = aux != _ROW_PAD                              # [TR, 1] real shifted row (KL set)
    ce_valid = aux >= 0                                      # [TR, 1] row counts for CE
    s = s_raw.astype(jnp.float32)
    s_max = jnp.max(s, axis=-1, keepdims=True)
    s_sh = s - s_max
    lse = jnp.log(jnp.sum(jnp.exp(s_sh), axis=-1, keepdims=True))
    col = jax.lax.broadcasted_iota(jnp.int32, s.shape, 1)
    picked = jnp.sum(jnp.where(col == aux, s_sh, 0.0), axis=-1, keepdims=True)
    ce_row = lse - picked                                    # = -log_softmax(s)[label]
    ce_sum = jnp.sum(jnp.where(ce_valid, ce_row, 0.0))       # select, not multiply (NaN-safe)
    ce_cnt = jnp.sum(jnp.where(ce_valid, 1.0, 0.0))
    return ce_sum, ce_cnt, s_sh, row_valid


def _kl_block(row_valid, s_sh, t_raw, inv_t):
    """Fused KL(teacher || student) at temperature 1/inv_t, summed over valid rows.

    kl_row = (sum(t_exp*tth) - sum(t_exp*ssh)) / t_sum + s_lse - log(t_sum),
    i.e. the (tth - ssh + s_lse) combination is never materialized as a [TR,V] temp.
    """
    t = t_raw.astype(jnp.float32)
    ssh = s_sh * inv_t                                       # reuse CE's (s - max(s)); /T
    s_lse = jnp.log(jnp.sum(jnp.exp(ssh), axis=-1, keepdims=True))
    tt = t * inv_t
    tth = tt - jnp.max(tt, axis=-1, keepdims=True)
    t_exp = jnp.exp(tth)
    t_sum = jnp.sum(t_exp, axis=-1, keepdims=True)
    num_a = jnp.sum(t_exp * tth, axis=-1, keepdims=True)
    num_b = jnp.sum(t_exp * ssh, axis=-1, keepdims=True)
    kl_row = (num_a - num_b) / t_sum + s_lse - jnp.log(t_sum)
    return jnp.sum(jnp.where(row_valid, kl_row, 0.0))        # select, not multiply (NaN-safe)


def _distill_kernel(aux_ref, s_ref, t_ref, ce_sum_ref, ce_cnt_ref, kl_sum_ref, *, inv_t):
    @pl.when(pl.program_id(1) == 0)
    def _():
        ce_sum_ref[...] = jnp.zeros_like(ce_sum_ref)
        ce_cnt_ref[...] = jnp.zeros_like(ce_cnt_ref)
        kl_sum_ref[...] = jnp.zeros_like(kl_sum_ref)

    aux = aux_ref[...]                                       # [TR, 1] int32 shifted labels
    ce_s, ce_c, s_sh, row_valid = _ce_block(aux, s_ref[...])
    kl_s = _kl_block(row_valid, s_sh, t_ref[...], inv_t)
    ce_sum_ref[...] += ce_s
    ce_cnt_ref[...] += ce_c
    kl_sum_ref[...] += kl_s


def _ce_kernel(aux_ref, s_ref, ce_sum_ref, ce_cnt_ref):
    @pl.when(pl.program_id(1) == 0)
    def _():
        ce_sum_ref[...] = jnp.zeros_like(ce_sum_ref)
        ce_cnt_ref[...] = jnp.zeros_like(ce_cnt_ref)

    aux = aux_ref[...]
    ce_s, ce_c, _, _ = _ce_block(aux, s_ref[...])
    ce_sum_ref[...] += ce_s
    ce_cnt_ref[...] += ce_c


# ---------------------------------------------------------------------------
# Wrapper plumbing
# ---------------------------------------------------------------------------
def _prep_labels(labels, B, S, tile_rows, num_rows, num_splits, tiles_per_split):
    """Shifted labels aligned to the *unshifted* [B*S] row layout (+ grid padding)."""
    rows_padded = num_splits * tiles_per_split * tile_rows
    lab = labels.astype(jnp.int32)
    aux = jnp.concatenate([lab[:, 1:], jnp.full((B, 1), _ROW_PAD, jnp.int32)], axis=1)
    aux = aux.reshape(num_rows)
    aux = jnp.pad(aux, (0, rows_padded - num_rows), constant_values=_ROW_PAD)
    return aux.reshape(rows_padded, 1)


def _run_kernels(s2, t2, aux, vocab, tile_rows, num_tiles, num_splits,
                 tiles_per_split, inv_t, vmem_limit):
    grid = (num_splits, tiles_per_split)

    if num_splits == 1:
        def logits_map(c, i):
            return (i, 0)
    else:
        def logits_map(c, i):
            # Clamp so a duplicate tail tile (odd tile count) stays in bounds; its
            # contributions are masked to zero via the aux (-1) sentinel stream.
            return (jnp.minimum(c * tiles_per_split + i, num_tiles - 1), 0)

    def aux_map(c, i):
        return (c * tiles_per_split + i, 0)

    def acc_map(c, i):
        return (c, 0, 0)

    acc_shape = jax.ShapeDtypeStruct((num_splits, _ACC_SUB, _ACC_LANE), jnp.float32)
    acc_spec = pl.BlockSpec((1, _ACC_SUB, _ACC_LANE), acc_map)
    aux_spec = pl.BlockSpec((tile_rows, 1), aux_map)
    logit_spec = pl.BlockSpec((tile_rows, vocab), logits_map)
    cparams = pltpu.CompilerParams(
        dimension_semantics=("parallel", "arbitrary"),
        vmem_limit_bytes=int(vmem_limit))

    rows = s2.shape[0]
    n_in = 1 if t2 is None else 2
    cost = pl.CostEstimate(
        flops=int((10 if t2 is not None else 5) * rows * vocab),
        transcendentals=int((3 if t2 is not None else 1) * rows * vocab),
        bytes_accessed=int(n_in * rows * vocab * s2.dtype.itemsize))

    if t2 is None:
        ce_sum, ce_cnt = pl.pallas_call(
            _ce_kernel,
            out_shape=(acc_shape, acc_shape),
            grid_spec=pltpu.PrefetchScalarGridSpec(
                num_scalar_prefetch=0, grid=grid,
                in_specs=[aux_spec, logit_spec],
                out_specs=(acc_spec, acc_spec)),
            compiler_params=cparams,
            cost_estimate=cost,
        )(aux, s2)
        return ce_sum, ce_cnt, None

    kernel = functools.partial(_distill_kernel, inv_t=inv_t)
    ce_sum, ce_cnt, kl_sum = pl.pallas_call(
        kernel,
        out_shape=(acc_shape, acc_shape, acc_shape),
        grid_spec=pltpu.PrefetchScalarGridSpec(
            num_scalar_prefetch=0, grid=grid,
            in_specs=[aux_spec, logit_spec, logit_spec],
            out_specs=(acc_spec, acc_spec, acc_spec)),
        compiler_params=cparams,
        cost_estimate=cost,
    )(aux, s2, t2)
    return ce_sum, ce_cnt, kl_sum


@functools.partial(jax.jit, static_argnames=("alpha", "temperature"))
def _distill_impl(student_logits, teacher_logits, labels, alpha, temperature):
    B, S, V = student_logits.shape
    num_rows = B * S
    budget, vmem_limit, cfg_splits = _tpu_config()
    tile_rows = _choose_tile_rows(num_rows, V, student_logits.dtype.itemsize, True, budget)
    num_tiles = -(-num_rows // tile_rows)
    num_splits = min(cfg_splits, num_tiles)
    tiles_per_split = -(-num_tiles // num_splits)

    aux = _prep_labels(labels, B, S, tile_rows, num_rows, num_splits, tiles_per_split)
    s2 = student_logits.reshape(num_rows, V)        # free reshape, no HBM copy
    t2 = teacher_logits.reshape(num_rows, V)

    ce_sum, ce_cnt, kl_sum = _run_kernels(
        s2, t2, aux, V, tile_rows, num_tiles, num_splits, tiles_per_split,
        1.0 / float(temperature), vmem_limit)

    ce_sum = ce_sum[:, 0, 0].sum()
    ce_cnt = ce_cnt[:, 0, 0].sum()
    kl_sum = kl_sum[:, 0, 0].sum()

    student_loss = ce_sum / jnp.maximum(ce_cnt, 1.0)        # guard all-ignored batches
    n_kl = max(B * (S - 1), 1)
    distillation = (kl_sum / n_kl) * (float(temperature) ** 2)
    total = alpha * student_loss + (1.0 - alpha) * distillation
    return total, student_loss, distillation


@jax.jit
def _ce_impl(student_logits, labels):
    B, S, V = student_logits.shape
    num_rows = B * S
    budget, vmem_limit, cfg_splits = _tpu_config()
    tile_rows = _choose_tile_rows(num_rows, V, student_logits.dtype.itemsize, False, budget)
    num_tiles = -(-num_rows // tile_rows)
    num_splits = min(cfg_splits, num_tiles)
    tiles_per_split = -(-num_tiles // num_splits)

    aux = _prep_labels(labels, B, S, tile_rows, num_rows, num_splits, tiles_per_split)
    s2 = student_logits.reshape(num_rows, V)

    ce_sum, ce_cnt, _ = _run_kernels(
        s2, None, aux, V, tile_rows, num_tiles, num_splits, tiles_per_split,
        1.0, vmem_limit)
    ce_sum = ce_sum[:, 0, 0].sum()
    ce_cnt = ce_cnt[:, 0, 0].sum()
    return ce_sum / jnp.maximum(ce_cnt, 1.0)


def distillation_loss(student_logits, teacher_logits, labels, alpha=0.5, temperature=3.0):
    """Pallas-backed equivalent of DistillationLoss.forward.

    Returns (total_loss, loss_dict); dict values are jnp scalars (no host sync).
    """
    if teacher_logits is None:
        student_loss = _ce_impl(student_logits, labels)
        return student_loss, {"student_loss": student_loss, "total_loss": student_loss}

    total, student_loss, distillation = _distill_impl(
        student_logits, teacher_logits, labels,
        alpha=float(alpha), temperature=float(temperature))
    return total, {"student_loss": student_loss,
                   "distillation_loss": distillation,
                   "total_loss": total}


# ---------------------------------------------------------------------------
# Pure-JAX references (verification only)
# ---------------------------------------------------------------------------
def _reference_ce(student, labels):
    B, S, V = student.shape
    s = student[:, :-1, :].reshape(-1, V).astype(jnp.float32)
    lab = labels[:, 1:].reshape(-1)
    logp = jax.nn.log_softmax(s, axis=-1)
    return -jnp.take_along_axis(logp, lab[:, None], axis=-1).mean()


def _reference_loss(student, teacher, labels, alpha=0.5, T=3.0):
    B, S, V = student.shape
    s = student[:, :-1, :].reshape(-1, V).astype(jnp.float32)
    t = teacher[:, :-1, :].reshape(-1, V).astype(jnp.float32)
    lab = labels[:, 1:].reshape(-1)
    logp = jax.nn.log_softmax(s, axis=-1)
    ce = -jnp.take_along_axis(logp, lab[:, None], axis=-1).mean()
    slp = jax.nn.log_softmax(s / T, axis=-1)
    tp = jax.nn.softmax(t / T, axis=-1)
    kl = jnp.sum(tp * (jnp.log(tp) - slp)) / s.shape[0] * (T ** 2)
    return alpha * ce + (1.0 - alpha) * kl


if __name__ == "__main__":
    B, S, V = 2, 8, 256
    key = jax.random.PRNGKey(0)
    k1, k2, k3 = jax.random.split(key, 3)
    student_logits = jax.random.normal(k1, (B, S, V), dtype=jnp.float32)
    teacher_logits = jax.random.normal(k2, (B, S, V), dtype=jnp.float32)
    labels = jax.random.randint(k3, (B, S), 0, V, dtype=jnp.int32)

    # f32 path
    total, loss_dict = distillation_loss(student_logits, teacher_logits, labels,
                                         alpha=0.5, temperature=3.0)
    total = jax.block_until_ready(total)
    ref = jax.block_until_ready(
        _reference_loss(student_logits, teacher_logits, labels, 0.5, 3.0))
    assert jnp.allclose(total, ref, rtol=1e-4, atol=1e-5), (total, ref)

    # bf16 inputs exercise the "DMA narrow dtype, cast in-kernel" path.
    s_bf = student_logits.astype(jnp.bfloat16)
    t_bf = teacher_logits.astype(jnp.bfloat16)
    total_bf, _ = distillation_loss(s_bf, t_bf, labels, alpha=0.5, temperature=3.0)
    ref_bf = _reference_loss(s_bf.astype(jnp.float32), t_bf.astype(jnp.float32),
                             labels, 0.5, 3.0)
    assert jnp.allclose(jax.block_until_ready(total_bf), ref_bf,
                        rtol=1e-4, atol=1e-5), (total_bf, ref_bf)

    # no-teacher path (CE-only kernel, no fabricated zero tensor / KL work).
    total_ce, _ = distillation_loss(student_logits, None, labels)
    ref_ce = _reference_ce(student_logits, labels)
    assert jnp.allclose(jax.block_until_ready(total_ce), ref_ce,
                        rtol=1e-4, atol=1e-5), (total_ce, ref_ce)

    print("KERNEL_OK")
</pallas_src>

<mosaic_0001>
module attributes {stable_mosaic.version = 11 : i64} {
  func.func @_distill_kernel(%arg0: i32, %arg1: i32, %arg2: memref<16x1xi32, #tpu.memory_space<vmem>>, %arg3: memref<16x256xf32, #tpu.memory_space<vmem>>, %arg4: memref<16x256xf32, #tpu.memory_space<vmem>>, %arg5: memref<1x8x128xf32, #tpu.memory_space<vmem>>, %arg6: memref<1x8x128xf32, #tpu.memory_space<vmem>>, %arg7: memref<1x8x128xf32, #tpu.memory_space<vmem>>) attributes {dimension_semantics = [#tpu.dimension_semantics<parallel>, #tpu.dimension_semantics<arbitrary>], iteration_bounds = array<i64: 1, 1>, scalar_prefetch = 0 : i64, scratch_operands = 0 : i64, tpu.core_type = #tpu.core_type<tc>, window_params = [{transform_indices = @transform_0, window_bounds = array<i64: 16, 1>}, {transform_indices = @transform_1, window_bounds = array<i64: 16, 256>}, {transform_indices = @transform_2, window_bounds = array<i64: 16, 256>}, {transform_indices = @transform_3, window_bounds = array<i64: 1, 8, 128>}, {transform_indices = @transform_4, window_bounds = array<i64: 1, 8, 128>}, {transform_indices = @transform_5, window_bounds = array<i64: 1, 8, 128>}]} {
    %c0_i32 = arith.constant 0 : i32
    %0 = arith.cmpi eq, %arg1, %c0_i32 : i32
    %1 = arith.extui %0 : i1 to i32
    %c0_i32_0 = arith.constant 0 : i32
    %2 = arith.cmpi ne, %1, %c0_i32_0 : i32
    scf.if %2 {
      %cst_42 = arith.constant 0.000000e+00 : f32
      %83 = vector.broadcast %cst_42 : f32 to vector<1x8x128xf32>
      %c0_43 = arith.constant 0 : index
      %c0_44 = arith.constant 0 : index
      %c0_45 = arith.constant 0 : index
      %84 = vector.load %arg5[%c0_43, %c0_44, %c0_45] : memref<1x8x128xf32, #tpu.memory_space<vmem>>, vector<1x8x128xf32>
      tpu.vector_store %arg5[%c0_43, %c0_44, %c0_45], %83 {strides = array<i32>} : memref<1x8x128xf32, #tpu.memory_space<vmem>>, vector<1x8x128xf32>,
      %cst_46 = arith.constant 0.000000e+00 : f32
      %85 = vector.broadcast %cst_46 : f32 to vector<1x8x128xf32>
      %c0_47 = arith.constant 0 : index
      %c0_48 = arith.constant 0 : index
      %c0_49 = arith.constant 0 : index
      %86 = vector.load %arg6[%c0_47, %c0_48, %c0_49] : memref<1x8x128xf32, #tpu.memory_space<vmem>>, vector<1x8x128xf32>
      tpu.vector_store %arg6[%c0_47, %c0_48, %c0_49], %85 {strides = array<i32>} : memref<1x8x128xf32, #tpu.memory_space<vmem>>, vector<1x8x128xf32>,
      %cst_50 = arith.constant 0.000000e+00 : f32
      %87 = vector.broadcast %cst_50 : f32 to vector<1x8x128xf32>
      %c0_51 = arith.constant 0 : index
      %c0_52 = arith.constant 0 : index
      %c0_53 = arith.constant 0 : index
      %88 = vector.load %arg7[%c0_51, %c0_52, %c0_53] : memref<1x8x128xf32, #tpu.memory_space<vmem>>, vector<1x8x128xf32>
      tpu.vector_store %arg7[%c0_51, %c0_52, %c0_53], %87 {strides = array<i32>} : memref<1x8x128xf32, #tpu.memory_space<vmem>>, vector<1x8x128xf32>,
    } else {
    }
    %c0 = arith.constant 0 : index
    %c0_1 = arith.constant 0 : index
    %3 = vector.load %arg2[%c0, %c0_1] : memref<16x1xi32, #tpu.memory_space<vmem>>, vector<16x1xi32>
    %c0_2 = arith.constant 0 : index
    %c0_3 = arith.constant 0 : index
    %4 = vector.load %arg3[%c0_2, %c0_3] : memref<16x256xf32, #tpu.memory_space<vmem>>, vector<16x256xf32>
    %c-1_i32 = arith.constant -1 : i32
    %5 = vector.broadcast %c-1_i32 : i32 to vector<16x1xi32>
    %6 = arith.cmpi ne, %3, %5 : vector<16x1xi32>
    %c0_i32_4 = arith.constant 0 : i32
    %7 = vector.broadcast %c0_i32_4 : i32 to vector<16x1xi32>
    %8 = arith.cmpi sge, %3, %7 : vector<16x1xi32>
    %cst = arith.constant dense<0xFF800000> : vector<16xf32>
    %9 = vector.multi_reduction <maximumf>, %4, %cst [1] : vector<16x256xf32> to vector<16xf32>
    %10 = vector.shape_cast %9 : vector<16xf32> to vector<16x1xf32>
    %11 = vector.broadcast %10 : vector<16x1xf32> to vector<16x256xf32>
    %12 = arith.subf %4, %11 : vector<16x256xf32>
    %13 = math.exp %12 : vector<16x256xf32>
    %cst_5 = arith.constant dense<0.000000e+00> : vector<16xf32>
    %14 = vector.multi_reduction <add>, %13, %cst_5 [1] : vector<16x256xf32> to vector<16xf32>
    %15 = vector.shape_cast %14 : vector<16xf32> to vector<16x1xf32>
    %16 = math.log %15 : vector<16x1xf32>
    %17 = tpu.iota {dimensions = array<i32: 1>} : vector<16x256xi32>
    %18 = vector.broadcast %3 : vector<16x1xi32> to vector<16x256xi32>
    %19 = arith.cmpi eq, %17, %18 : vector<16x256xi32>
    %cst_6 = arith.constant 0.000000e+00 : f32
    %20 = vector.broadcast %cst_6 : f32 to vector<16x256xf32>
    %21 = arith.select %19, %12, %20 : vector<16x256xi1>, vector<16x256xf32>
    %cst_7 = arith.constant dense<0.000000e+00> : vector<16xf32>
    %22 = vector.multi_reduction <add>, %21, %cst_7 [1] : vector<16x256xf32> to vector<16xf32>
    %23 = vector.shape_cast %22 : vector<16xf32> to vector<16x1xf32>
    %24 = arith.subf %16, %23 : vector<16x1xf32>
    %cst_8 = arith.constant 0.000000e+00 : f32
    %25 = vector.broadcast %cst_8 : f32 to vector<16x1xf32>
    %26 = arith.select %8, %24, %25 : vector<16x1xi1>, vector<16x1xf32>
    %27 = vector.shape_cast %26 : vector<16x1xf32> to vector<1x16x1xf32>
    %cst_9 = arith.constant dense<0.000000e+00> : vector<1xf32>
    %28 = vector.multi_reduction <add>, %27, %cst_9 [1, 2] : vector<1x16x1xf32> to vector<1xf32>
    %29 = vector.shape_cast %28 : vector<1xf32> to vector<1x1x1xf32>
    %30 = vector.extract %29[0, 0, 0] : f32 from vector<1x1x1xf32>
    %cst_10 = arith.constant 1.000000e+00 : f32
    %cst_11 = arith.constant 0.000000e+00 : f32
    %31 = vector.broadcast %cst_10 : f32 to vector<16x1xf32>
    %32 = vector.broadcast %cst_11 : f32 to vector<16x1xf32>
    %33 = arith.select %8, %31, %32 : vector<16x1xi1>, vector<16x1xf32>
    %34 = vector.shape_cast %33 : vector<16x1xf32> to vector<1x16x1xf32>
    %cst_12 = arith.constant dense<0.000000e+00> : vector<1xf32>
    %35 = vector.multi_reduction <add>, %34, %cst_12 [1, 2] : vector<1x16x1xf32> to vector<1xf32>
    %36 = vector.shape_cast %35 : vector<1xf32> to vector<1x1x1xf32>
    %37 = vector.extract %36[0, 0, 0] : f32 from vector<1x1x1xf32>
    %c0_13 = arith.constant 0 : index
    %c0_14 = arith.constant 0 : index
    %38 = vector.load %arg4[%c0_13, %c0_14] : memref<16x256xf32, #tpu.memory_space<vmem>>, vector<16x256xf32>
    %cst_15 = arith.constant 0.333333343 : f32
    %39 = vector.broadcast %cst_15 : f32 to vector<16x256xf32>
    %40 = arith.mulf %12, %39 : vector<16x256xf32>
    %41 = math.exp %40 : vector<16x256xf32>
    %cst_16 = arith.constant dense<0.000000e+00> : vector<16xf32>
    %42 = vector.multi_reduction <add>, %41, %cst_16 [1] : vector<16x256xf32> to vector<16xf32>
    %43 = vector.shape_cast %42 : vector<16xf32> to vector<16x1xf32>
    %44 = math.log %43 : vector<16x1xf32>
    %cst_17 = arith.constant 0.333333343 : f32
    %45 = vector.broadcast %cst_17 : f32 to vector<16x256xf32>
    %46 = arith.mulf %38, %45 : vector<16x256xf32>
    %cst_18 = arith.constant dense<0xFF800000> : vector<16xf32>
    %47 = vector.multi_reduction <maximumf>, %46, %cst_18 [1] : vector<16x256xf32> to vector<16xf32>
    %48 = vector.shape_cast %47 : vector<16xf32> to vector<16x1xf32>
    %49 = vector.broadcast %48 : vector<16x1xf32> to vector<16x256xf32>
    %50 = arith.subf %46, %49 : vector<16x256xf32>
    %51 = math.exp %50 : vector<16x256xf32>
    %cst_19 = arith.constant dense<0.000000e+00> : vector<16xf32>
    %52 = vector.multi_reduction <add>, %51, %cst_19 [1] : vector<16x256xf32> to vector<16xf32>
    %53 = vector.shape_cast %52 : vector<16xf32> to vector<16x1xf32>
    %54 = arith.mulf %51, %50 : vector<16x256xf32>
    %cst_20 = arith.constant dense<0.000000e+00> : vector<16xf32>
    %55 = vector.multi_reduction <add>, %54, %cst_20 [1] : vector<16x256xf32> to vector<16xf32>
    %56 = vector.shape_cast %55 : vector<16xf32> to vector<16x1xf32>
    %57 = arith.mulf %51, %40 : vector<16x256xf32>
    %cst_21 = arith.constant dense<0.000000e+00> : vector<16xf32>
    %58 = vector.multi_reduction <add>, %57, %cst_21 [1] : vector<16x256xf32> to vector<16xf32>
    %59 = vector.shape_cast %58 : vector<16xf32> to vector<16x1xf32>
    %60 = arith.subf %56, %59 : vector<16x1xf32>
    %61 = arith.divf %60, %53 : vector<16x1xf32>
    %62 = arith.addf %61, %44 : vector<16x1xf32>
    %63 = math.log %53 : vector<16x1xf32>
    %64 = arith.subf %62, %63 : vector<16x1xf32>
    %cst_22 = arith.constant 0.000000e+00 : f32
    %65 = vector.broadcast %cst_22 : f32 to vector<16x1xf32>
    %66 = arith.select %6, %64, %65 : vector<16x1xi1>, vector<16x1xf32>
    %67 = vector.shape_cast %66 : vector<16x1xf32> to vector<1x16x1xf32>
    %cst_23 = arith.constant dense<0.000000e+00> : vector<1xf32>
    %68 = vector.multi_reduction <add>, %67, %cst_23 [1, 2] : vector<1x16x1xf32> to vector<1xf32>
    %69 = vector.shape_cast %68 : vector<1xf32> to vector<1x1x1xf32>
    %70 = vector.extract %69[0, 0, 0] : f32 from vector<1x1x1xf32>
    %c0_24 = arith.constant 0 : index
    %c0_25 = arith.constant 0 : index
    %c0_26 = arith.constant 0 : index
    %71 = vector.load %arg5[%c0_24, %c0_25, %c0_26] : memref<1x8x128xf32, #tpu.memory_space<vmem>>, vector<1x8x128xf32>
    %72 = vector.broadcast %30 : f32 to vector<1x8x128xf32>
    %73 = arith.addf %71, %72 : vector<1x8x128xf32>
    %c0_27 = arith.constant 0 : index
    %c0_28 = arith.constant 0 : index
    %c0_29 = arith.constant 0 : index
    %74 = vector.load %arg5[%c0_27, %c0_28, %c0_29] : memref<1x8x128xf32, #tpu.memory_space<vmem>>, vector<1x8x128xf32>
    tpu.vector_store %arg5[%c0_27, %c0_28, %c0_29], %73 {strides = array<i32>} : memref<1x8x128xf32, #tpu.memory_space<vmem>>, vector<1x8x128xf32>,
    %c0_30 = arith.constant 0 : index
    %c0_31 = arith.constant 0 : index
    %c0_32 = arith.constant 0 : index
    %75 = vector.load %arg6[%c0_30, %c0_31, %c0_32] : memref<1x8x128xf32, #tpu.memory_space<vmem>>, vector<1x8x128xf32>
    %76 = vector.broadcast %37 : f32 to vector<1x8x128xf32>
    %77 = arith.addf %75, %76 : vector<1x8x128xf32>
    %c0_33 = arith.constant 0 : index
    %c0_34 = arith.constant 0 : index
    %c0_35 = arith.constant 0 : index
    %78 = vector.load %arg6[%c0_33, %c0_34, %c0_35] : memref<1x8x128xf32, #tpu.memory_space<vmem>>, vector<1x8x128xf32>
    tpu.vector_store %arg6[%c0_33, %c0_34, %c0_35], %77 {strides = array<i32>} : memref<1x8x128xf32, #tpu.memory_space<vmem>>, vector<1x8x128xf32>,
    %c0_36 = arith.constant 0 : index
    %c0_37 = arith.constant 0 : index
    %c0_38 = arith.constant 0 : index
    %79 = vector.load %arg7[%c0_36, %c0_37, %c0_38] : memref<1x8x128xf32, #tpu.memory_space<vmem>>, vector<1x8x128xf32>
    %80 = vector.broadcast %70 : f32 to vector<1x8x128xf32>
    %81 = arith.addf %79, %80 : vector<1x8x128xf32>
    %c0_39 = arith.constant 0 : index
    %c0_40 = arith.constant 0 : index
    %c0_41 = arith.constant 0 : index
    %82 = vector.load %arg7[%c0_39, %c0_40, %c0_41] : memref<1x8x128xf32, #tpu.memory_space<vmem>>, vector<1x8x128xf32>
    tpu.vector_store %arg7[%c0_39, %c0_40, %c0_41], %81 {strides = array<i32>} : memref<1x8x128xf32, #tpu.memory_space<vmem>>, vector<1x8x128xf32>,
    return
  }
  func.func @transform_0(%arg0: i32, %arg1: i32) -> (i32, i32) {
    %c1_i32 = arith.constant 1 : i32
    %0 = arith.muli %arg0, %c1_i32 : i32
    %1 = arith.addi %0, %arg1 : i32
    %c0_i32 = arith.constant 0 : i32
    %c0_i32_0 = arith.constant 0 : i32
    return %1, %c0_i32 : i32, i32
  }
  func.func @transform_1(%arg0: i32, %arg1: i32) -> (i32, i32) {
    %c0_i32 = arith.constant 0 : i32
    %c0_i32_0 = arith.constant 0 : i32
    return %arg1, %c0_i32 : i32, i32
  }
  func.func @transform_2(%arg0: i32, %arg1: i32) -> (i32, i32) {
    %c0_i32 = arith.constant 0 : i32
    %c0_i32_0 = arith.constant 0 : i32
    return %arg1, %c0_i32 : i32, i32
  }
  func.func @transform_3(%arg0: i32, %arg1: i32) -> (i32, i32, i32) {
    %c0_i32 = arith.constant 0 : i32
    %c0_i32_0 = arith.constant 0 : i32
    %c0_i32_1 = arith.constant 0 : i32
    return %arg0, %c0_i32, %c0_i32_0 : i32, i32, i32
  }
  func.func @transform_4(%arg0: i32, %arg1: i32) -> (i32, i32, i32) {
    %c0_i32 = arith.constant 0 : i32
    %c0_i32_0 = arith.constant 0 : i32
    %c0_i32_1 = arith.constant 0 : i32
    return %arg0, %c0_i32, %c0_i32_0 : i32, i32, i32
  }
  func.func @transform_5(%arg0: i32, %arg1: i32) -> (i32, i32, i32) {
    %c0_i32 = arith.constant 0 : i32
    %c0_i32_0 = arith.constant 0 : i32
    %c0_i32_1 = arith.constant 0 : i32
    return %arg0, %c0_i32, %c0_i32_0 : i32, i32, i32
  }
}

</mosaic_0001>

<llo_original>
// kernel: _distill_impl.1
$region0: #{_distill_impl.1}
  #allocation0 [shape = 'u32[]', space=smem, size = 0x4, offset = 0x4, fixed_abs, tag = 'smem constant byte address 0x4 - core index']
  #allocation1 [shape = 'u32[144,128]{1,0:T(1,128)}', space=vmem, size = 0x12000, scoped, tag = 'internal scratch']
  %s0 = inlined_call_operand.vmem [shape: s32[16,1], index: 0, kind: input, shape index: {}]
  %s1 = inlined_call_operand.hbm [shape: f32[16,256], index: 1, kind: input, shape index: {}]
  %s2 = inlined_call_operand.vmem [shape: f32[16,256], index: 2, kind: input, shape index: {}]
  %s3 = inlined_call_operand.vmem [shape: f32[1,8,128], index: 3, kind: output, shape index: {0}]
  %s4 = inlined_call_operand.vmem [shape: f32[1,8,128], index: 4, kind: output, shape index: {1}]
  %s5 = inlined_call_operand.vmem [shape: f32[1,8,128], index: 5, kind: output, shape index: {2}]
  %6 = xla_tuple %s3, %s4, %s5
  %s7 = sld [smem:[#allocation0]]
  $region46: #{_distill_impl.1} parent=0
    _
  %s9 = ssub.s32 1, %s7
  %s10 = scalar_select 0, %s9, %s7
  $region1: #{_distill_impl.1} parent=0
    #allocation2 [shape = 'u8[16384]{0}', space=vmem, size = 0x4000, scoped, tag = 'input window, operand 1, single buffered']
    #allocation3 [shape = 's32[1]{0}', space=sflag, size = 0x4, scoped, tag = 'scoped memory for _distill_impl.1']
    %11 = vsyncpa [#allocation3], 0
    // Predicated region
    $region2: #{_distill_impl.1} parent=1 // pred_check
      _
    $region3: #{_distill_impl.1} parent=1 // pred_check_branch
      %13 = sbr.rel (0) target = $region5
    $region4: #{_distill_impl.1} parent=1 // pred_region
      %s14 = sadd.s32 0, 0
      %s15 = smul.u32 2, %s14
      %p16 = scmp.lt.s32.totalorder %s15, 1
      %s17 = scalar_select %p16, %s15, 1
      %s18 = smul.addr %s17, 8
      %s19 = scalar_lea.vmem %s0, %s18
      %s20 = sadd.s32 0, 0
      %s21 = smul.u32 2, %s20
    $region5: #{_distill_impl.1} parent=1 // pred_fallthru
      _
    // Predicated region
    $region6: #{_distill_impl.1} parent=1 // pred_check
      _
    $region7: #{_distill_impl.1} parent=1 // pred_check_branch
      %23 = sbr.rel (0) target = $region9
    $region8: #{_distill_impl.1} parent=1 // pred_region
      %s25 = ssub.s32 512, 512
      %26 = vsyncadd [#allocation3], %s25
      %s27 = sshll.u32 [#allocation2], 4
      %s28 = int_to_ptr.vmem [resolvable:$true] %s27
      %33 = dma.hbm_to_vmem [thread:$0]  %s1, 512, %s28, [#allocation3], 256, 256, 16
    $region9: #{_distill_impl.1} parent=1 // pred_fallthru
      _
    // Predicated region
    $region10: #{_distill_impl.1} parent=1 // pred_check
      _
    $region11: #{_distill_impl.1} parent=1 // pred_check_branch
      %35 = sbr.rel (0) target = $region13
    $region12: #{_distill_impl.1} parent=1 // pred_region
      _
    $region13: #{_distill_impl.1} parent=1 // pred_fallthru
      _
    // Predicated region
    $region14: #{_distill_impl.1} parent=1 // pred_check
      _
    $region15: #{_distill_impl.1} parent=1 // pred_check_branch
      %37 = sbr.rel (0) target = $region17
    $region16: #{_distill_impl.1} parent=1 // pred_region
      %38 = dma.done [#allocation3], 512
    $region17: #{_distill_impl.1} parent=1 // pred_fallthru
      _
    %s39 = sadd.s32 0, 0
    %s40 = smul.u32 2, %s39
    %p41 = scmp.lt.s32.totalorder %s40, 1
    %s42 = scalar_select %p41, %s40, 1
    %s43 = smul.addr %s42, 8
    %s44 = scalar_lea.vmem %s0, %s43
    %s45 = sadd.s32 0, 0
    %s46 = smul.u32 2, %s45
    %p47 = scmp.lt.s32.totalorder %s46, 1
    %s48 = scalar_select %p47, %s46, 1
    %s49 = smul.addr %s48, 8
    %s50 = scalar_lea.vmem %s0, %s49
    %s51 = sadd.s32 0, 0
    %s52 = smul.u32 2, %s51
    %p53 = scmp.eq.s32.totalorder 0, 0
    // Predicated region
    $region18: #{_distill_impl.1} parent=1 // pred_check
      %p54 = pneg %p53
    $region19: #{_distill_impl.1} parent=1 // pred_check_branch
      %56 = sbr.rel (%p54) target = $region21
    $region20: #{_distill_impl.1} parent=1 // pred_region
      %57 = vst [vmem:[%s3] sm:$0xff] 0.0
      %58 = vst [vmem:[%s4] sm:$0xff] 0.0
      %59 = vst [vmem:[%s5] sm:$0xff] 0.0
    $region21: #{_distill_impl.1} parent=1 // pred_fallthru
      _
    %v60 = vld [vmem:[%s50] sm:$0xff]
    %v61 = vld [vmem:[%s50 + $0x8] sm:$0xff]
    %v62 = vld [vmem:[#allocation2] sm:$0xff]
    %v63 = vld [vmem:[#allocation2 + $0x8] sm:$0xff]
    %v64 = vld [vmem:[#allocation2 + $0x10] sm:$0xff]
    %v65 = vld [vmem:[#allocation2 + $0x18] sm:$0xff]
    %vm66 = vcmp.ne.s32.totalorder %v60, 4294967295
    %vm67 = vcmp.ne.s32.totalorder %v61, 4294967295
    %vm68 = vcmp.ge.s32.totalorder %v60, 0
    %vm69 = vcmp.ge.s32.totalorder %v61, 0
    %v70 = vmax.f32 %v62, %v63
    %71 = vmax.xlane.f32.xlu0 %v70
    %v72 = vpop.xlane.xlu0 %71
    %v73 = vmax.f32 %v64, %v65
    %74 = vmax.xlane.f32.xlu0 %v73
    %v75 = vpop.xlane.xlu0 %74
    %v76 = vsub.f32 %v62, %v72
    %v77 = vsub.f32 %v63, %v72
    %v78 = vsub.f32 %v64, %v75
    %v79 = vsub.f32 %v65, %v75
    %v80 = vmul.f32 %v76, 1.442695
    %v81 = vpow.pop %v80
    %v82 = vmul.f32 %v77, 1.442695
    %v83 = vpow.pop %v82
    %v84 = vmul.f32 %v78, 1.442695
    %v85 = vpow.pop %v84
    %v86 = vmul.f32 %v79, 1.442695
    %v87 = vpow.pop %v86
    %v88 = vadd.f32 %v81, %v83
    %89 = vadd.xlane.f32.xlu0 %v88
    %v90 = vpop.xlane.xlu0 %89
    %v91 = vadd.f32 %v85, %v87
    %92 = vadd.xlane.f32.xlu0 %v91
    %v93 = vpop.xlane.xlu0 %92
    %v94 = vlog2.pop %v90
    %v95 = vmul.f32 %v94, 0.6931472
    %v96 = vlog2.pop %v93
    %v97 = vmul.f32 %v96, 0.6931472
    %v98 = vlaneseq
    %v99 = vand.u32 %v98, 127
    %v100 = vadd.s32 %v99, 128
    %101 = vset.pattern.permute.xlu0 0
    %102 = vperm.xlu0 %101, %v60
    %v103 = vpop.permute.xlu0 %102
    %104 = vset.pattern.permute.xlu0 0
    %105 = vperm.xlu0 %104, %v61
    %v106 = vpop.permute.xlu0 %105
    %vm107 = vcmp.eq.s32.totalorder %v99, %v103
    %vm108 = vcmp.eq.s32.totalorder %v100, %v103
    %vm109 = vcmp.eq.s32.totalorder %v99, %v106
    %vm110 = vcmp.eq.s32.totalorder %v100, %v106
    %v111 = vsel %vm107, %v76, 0.0
    %v112 = vsel %vm108, %v77, 0.0
    %v113 = vsel %vm109, %v78, 0.0
    %v114 = vsel %vm110, %v79, 0.0
    %v115 = vadd.f32 %v111, %v112
    %116 = vadd.xlane.f32.xlu0 %v115
    %v117 = vpop.xlane.xlu0 %116
    %v118 = vadd.f32 %v113, %v114
    %119 = vadd.xlane.f32.xlu0 %v118
    %v120 = vpop.xlane.xlu0 %119
    %v121 = vsub.f32 %v95, %v117
    %v122 = vsub.f32 %v97, %v120
    %v123 = vsel %vm68, %v121, 0.0
    %v124 = vsel %vm69, %v122, 0.0
    %vm125 = vcmask 7168
    %v126 = vsel %vm125, %v123, 0.0
    %v127 = vsel %vm125, %v124, 0.0
    %v128 = vadd.f32 %v126, %v127
    %129 = vadd.xlane.f32.xlu0 %v128
    %v130 = vpop.xlane.xlu0 %129
    %v131 = vrot.slane %v130, 4
    %v132 = vadd.f32 %v130, %v131
    %v133 = vrot.slane %v132, 2
    %v134 = vadd.f32 %v132, %v133
    %v135 = vrot.slane %v134, 1
    %v136 = vadd.f32 %v134, %v135
    %s137 = vtos %v136
    %v138 = vsel %vm68, 1.0, 0.0
    %v139 = vsel %vm69, 1.0, 0.0
    %v140 = vsel %vm125, %v138, 0.0
    %v141 = vsel %vm125, %v139, 0.0
    %v142 = vadd.f32 %v140, %v141
    %143 = vadd.xlane.f32.xlu0 %v142
    %v144 = vpop.xlane.xlu0 %143
    %v145 = vrot.slane %v144, 4
    %v146 = vadd.f32 %v144, %v145
    %v147 = vrot.slane %v146, 2
    %v148 = vadd.f32 %v146, %v147
    %v149 = vrot.slane %v148, 1
    %v150 = vadd.f32 %v148, %v149
    %s151 = vtos %v150
    %v152 = vld [vmem:[%s2] sm:$0xff]
    %v153 = vld [vmem:[%s2 + $0x8] sm:$0xff]
    %v154 = vld [vmem:[%s2 + $0x10] sm:$0xff]
    %v155 = vld [vmem:[%s2 + $0x18] sm:$0xff]
    %v156 = vmul.f32 %v76, 0.33333334
    %v157 = vmul.f32 %v77, 0.33333334
    %v158 = vmul.f32 %v78, 0.33333334
    %v159 = vmul.f32 %v79, 0.33333334
    %v160 = vmul.f32 %v156, 1.442695
    %v161 = vpow.pop %v160
    %v162 = vmul.f32 %v157, 1.442695
    %v163 = vpow.pop %v162
    %v164 = vmul.f32 %v158, 1.442695
    %v165 = vpow.pop %v164
    %v166 = vmul.f32 %v159, 1.442695
    %v167 = vpow.pop %v166
    %v168 = vadd.f32 %v161, %v163
    %169 = vadd.xlane.f32.xlu0 %v168
    %v170 = vpop.xlane.xlu0 %169
    %v171 = vadd.f32 %v165, %v167
    %172 = vadd.xlane.f32.xlu0 %v171
    %v173 = vpop.xlane.xlu0 %172
    %v174 = vlog2.pop %v170
    %v175 = vmul.f32 %v174, 0.6931472
    %v176 = vlog2.pop %v173
    %v177 = vmul.f32 %v176, 0.6931472
    %v178 = vmul.f32 %v152, 0.33333334
    %v179 = vmul.f32 %v153, 0.33333334
    %v180 = vmul.f32 %v154, 0.33333334
    %v181 = vmul.f32 %v155, 0.33333334
    %v182 = vmax.f32 %v178, %v179
    %183 = vmax.xlane.f32.xlu0 %v182
    %v184 = vpop.xlane.xlu0 %183
    %v185 = vmax.f32 %v180, %v181
    %186 = vmax.xlane.f32.xlu0 %v185
    %v187 = vpop.xlane.xlu0 %186
    %v188 = vsub.f32 %v178, %v184
    %v189 = vsub.f32 %v179, %v184
    %v190 = vsub.f32 %v180, %v187
    %v191 = vsub.f32 %v181, %v187
    %v192 = vmul.f32 %v188, 1.442695
    %v193 = vpow.pop %v192
    %v194 = vmul.f32 %v189, 1.442695
    %v195 = vpow.pop %v194
    %v196 = vmul.f32 %v190, 1.442695
    %v197 = vpow.pop %v196
    %v198 = vmul.f32 %v191, 1.442695
    %v199 = vpow.pop %v198
    %v200 = vadd.f32 %v193, %v195
    %201 = vadd.xlane.f32.xlu0 %v200
    %v202 = vpop.xlane.xlu0 %201
    %v203 = vadd.f32 %v197, %v199
    %204 = vadd.xlane.f32.xlu0 %v203
    %v205 = vpop.xlane.xlu0 %204
    %v206 = vmul.f32 %v193, %v188
    %v207 = vmul.f32 %v195, %v189
    %v208 = vmul.f32 %v197, %v190
    %v209 = vmul.f32 %v199, %v191
    %v210 = vadd.f32 %v206, %v207
    %211 = vadd.xlane.f32.xlu0 %v210
    %v212 = vpop.xlane.xlu0 %211
    %v213 = vadd.f32 %v208, %v209
    %214 = vadd.xlane.f32.xlu0 %v213
    %v215 = vpop.xlane.xlu0 %214
    %v216 = vmul.f32 %v193, %v156
    %v217 = vmul.f32 %v195, %v157
    %v218 = vmul.f32 %v197, %v158
    %v219 = vmul.f32 %v199, %v159
    %v220 = vadd.f32 %v216, %v217
    %221 = vadd.xlane.f32.xlu0 %v220
    %v222 = vpop.xlane.xlu0 %221
    %v223 = vadd.f32 %v218, %v219
    %224 = vadd.xlane.f32.xlu0 %v223
    %v225 = vpop.xlane.xlu0 %224
    %v226 = vsub.f32 %v212, %v222
    %v227 = vsub.f32 %v215, %v225
    %v228 = vrcp.pop %v202
    %v229 = vmul.f32 %v226, %v228
    %v230 = vrcp.pop %v205
    %v231 = vmul.f32 %v227, %v230
    %v232 = vadd.f32 %v229, %v175
    %v233 = vadd.f32 %v231, %v177
    %v234 = vlog2.pop %v202
    %v235 = vmul.f32 %v234, 0.6931472
    %v236 = vlog2.pop %v205
    %v237 = vmul.f32 %v236, 0.6931472
    %v238 = vsub.f32 %v232, %v235
    %v239 = vsub.f32 %v233, %v237
    %v240 = vsel %vm66, %v238, 0.0
    %v241 = vsel %vm67, %v239, 0.0
    %v242 = vsel %vm125, %v240, 0.0
    %v243 = vsel %vm125, %v241, 0.0
    %v244 = vadd.f32 %v242, %v243
    %245 = vadd.xlane.f32.xlu0 %v244
    %v246 = vpop.xlane.xlu0 %245
    %v247 = vrot.slane %v246, 4
    %v248 = vadd.f32 %v246, %v247
    %v249 = vrot.slane %v248, 2
    %v250 = vadd.f32 %v248, %v249
    %v251 = vrot.slane %v250, 1
    %v252 = vadd.f32 %v250, %v251
    %s253 = vtos %v252
    %v254 = vld [vmem:[%s3] sm:$0xff]
    %v255 = vstv %s137
    %v256 = vadd.f32 %v254, %v255
    %257 = vst [vmem:[%s3] sm:$0xff] %v256
    %v258 = vld [vmem:[%s4] sm:$0xff]
    %v259 = vstv %s151
    %v260 = vadd.f32 %v258, %v259
    %261 = vst [vmem:[%s4] sm:$0xff] %v260
    %v262 = vld [vmem:[%s5] sm:$0xff]
    %v263 = vstv %s253
    %v264 = vadd.f32 %v262, %v263
    %265 = vst [vmem:[%s5] sm:$0xff] %v264
    // Predicated region
    $region22: #{_distill_impl.1} parent=1 // pred_check
      _
    $region23: #{_distill_impl.1} parent=1 // pred_check_branch
      %267 = sbr.rel (0) target = $region25
    $region24: #{_distill_impl.1} parent=1 // pred_region
      _
    $region25: #{_distill_impl.1} parent=1 // pred_fallthru
      _
    // Predicated region
    $region26: #{_distill_impl.1} parent=1 // pred_check
      _
    $region27: #{_distill_impl.1} parent=1 // pred_check_branch
      %269 = sbr.rel (0) target = $region29
    $region28: #{_distill_impl.1} parent=1 // pred_region
      _
    $region29: #{_distill_impl.1} parent=1 // pred_fallthru
      _
    // Predicated region
    $region30: #{_distill_impl.1} parent=1 // pred_check
      _
    $region31: #{_distill_impl.1} parent=1 // pred_check_branch
      %271 = sbr.rel (0) target = $region33
    $region32: #{_distill_impl.1} parent=1 // pred_region
      _
    $region33: #{_distill_impl.1} parent=1 // pred_fallthru
      _
    // Predicated region
    $region34: #{_distill_impl.1} parent=1 // pred_check
      _
    $region35: #{_distill_impl.1} parent=1 // pred_check_branch
      %273 = sbr.rel (0) target = $region37
    $region36: #{_distill_impl.1} parent=1 // pred_region
      _
    $region37: #{_distill_impl.1} parent=1 // pred_fallthru
      _
    // Predicated region
    $region38: #{_distill_impl.1} parent=1 // pred_check
      _
    $region39: #{_distill_impl.1} parent=1 // pred_check_branch
      %275 = sbr.rel (0) target = $region41
    $region40: #{_distill_impl.1} parent=1 // pred_region
      _
    $region41: #{_distill_impl.1} parent=1 // pred_fallthru
      _
    // Predicated region
    $region42: #{_distill_impl.1} parent=1 // pred_check
      _
    $region43: #{_distill_impl.1} parent=1 // pred_check_branch
      %277 = sbr.rel (0) target = $region45
    $region44: #{_distill_impl.1} parent=1 // pred_region
      _
    $region45: #{_distill_impl.1} parent=1 // pred_fallthru
      _
    %278 = vsyncpa [#allocation3], 1

</llo_original>
